<compile_context>
chip_gen: v6e
topology: v6e:2x2x1
jax: 0.10.0
libtpu: 0.0.40
codegen_flags: <defaults>
</compile_context>

<pallas_src>
import jax
import jax.numpy as jnp
from jax.experimental import pallas as pl
from jax.experimental.pallas import tpu as pltpu

LANES = 128


def _round_up(x, m):
    return (x + m - 1) // m * m


def _make_kernel(d_in):
    """Builds the fused kernel, closing over the static layer-1 contraction width."""

    def kernel(x_ref, ext_ref, w_ref, w3b_ref, b_ref, out_ref):
        """Fused forward of Combined_model.

        x_ref   : (tb, D_in)    f32  flattened time-series input (natural width).
        ext_ref : (tb, E)       f32  external features ("last_arg").
        w_ref   : (4*128, 128)  bf16 resident weight slab; chunk k = layer-(k+1)
                                weight zero-padded to 128x128 (chunk 2 = W3a only).
        w3b_ref : (E, 128)      bf16 ext half of the layer-3 weight (lane padded).
        b_ref   : (8, 128)      f32  bias slab, rows 0..3 = b1..b4 (lane padded).
        out_ref : (tb, 128)     bf16 lanes [0:O) hold the real output (lane-dense).
        """
        x = x_ref[...].astype(jnp.bfloat16)        # (tb, D_in) bf16
        ex = ext_ref[...].astype(jnp.bfloat16)     # (tb, E)    bf16
        b = b_ref[...]                             # (8, 128)   f32, read once

        def wchunk(k, rows=LANES):
            # Static slice of one 128x128 (or D_in x 128) bf16 weight chunk.
            return w_ref[pl.ds(k * LANES, rows), :]

        # ---- time_series_model (params frozen in torch; forward identical) ----
        # TODO(synk): keep layer 1 in f32 if exact parity with the f32 torch model
        # is ever required (kernel is DMA-bound, the MXU cost would be hidden).
        h = jnp.maximum(
            jnp.dot(x, wchunk(0, d_in), preferred_element_type=jnp.float32)
            + b[0:1, :], 0.0)
        pred = (jnp.dot(h.astype(jnp.bfloat16), wchunk(1),
                        preferred_element_type=jnp.float32) + b[1:2, :])

        # ---- external_model(time_series_predict, last_arg) ----
        # concat([pred, ext]) @ W3  ==  pred @ W3a + ext @ W3b : no lane concat,
        # zero-padded weight rows annihilate any padded activation lanes.
        z = (jnp.dot(pred.astype(jnp.bfloat16), wchunk(2),
                     preferred_element_type=jnp.float32)
             + jnp.dot(ex, w3b_ref[...], preferred_element_type=jnp.float32)
             + b[2:3, :])
        z = jnp.maximum(z, 0.0)
        out = (jnp.dot(z.astype(jnp.bfloat16), wchunk(3),
                       preferred_element_type=jnp.float32) + b[3:4, :])
        out_ref[...] = out.astype(out_ref.dtype)

    return kernel


def combined_forward(x_flat, ext, params, *, tb=None):
    """x_flat: (B, D_in) flattened time-series input; ext: (B, E) external features."""
    (w1, b1, w2, b2, w3a, w3b, b3, w4, b4) = params
    B, D_in = x_flat.shape
    E = ext.shape[1]
    H1, P = w1.shape[1], w2.shape[1]
    H2, O = w3a.shape[1], w4.shape[1]

    # Every feature dim must fit one 128-lane tile for this fused plan.
    # TODO(synk): add a K/N grid axis (tiled weight slab) if any dim exceeds 128.
    assert max(D_in, H1, P, H2, O, E) <= LANES, "feature dim exceeds one lane tile"
    assert w1.shape[0] == D_in and w2.shape[0] == H1, "bad time_series_model shapes"
    assert w3a.shape[0] == P and w3b.shape[0] == E and w4.shape[0] == H2, \
        "bad external_model shapes"

    # ---- pack weights: one resident bf16 slab + tiny W3b operand + f32 bias slab.
    def pad_w(w):
        return jnp.zeros((LANES, LANES), jnp.float32).at[:w.shape[0], :w.shape[1]].set(w)

    def pad_b(bb):
        return jnp.zeros((1, LANES), jnp.float32).at[:, :bb.shape[-1]].set(bb.reshape(1, -1))

    w_slab = jnp.concatenate(
        [pad_w(w1), pad_w(w2), pad_w(w3a), pad_w(w4)], axis=0).astype(jnp.bfloat16)
    w3b_op = jnp.zeros((E, LANES), jnp.float32).at[:, :H2].set(w3b).astype(jnp.bfloat16)
    b_slab = jnp.concatenate(
        [pad_b(b1), pad_b(b2), pad_b(b3), pad_b(b4),
         jnp.zeros((4, LANES), jnp.float32)], axis=0)                      # (8, 128)

    # ---- batch tiling: >= 2 tiles (both v7x TensorCores), <= 2048 rows/tile.
    if tb is None:
        b8 = _round_up(B, 8)
        tb = max(8, min(_round_up(-(-b8 // 2), 8), 2048))
    tb = _round_up(tb, 8)
    B_pad = _round_up(B, tb)
    if B_pad != B:  # only stage a (narrow) padded copy when actually required
        x_flat = jnp.pad(x_flat, ((0, B_pad - B), (0, 0)))
        ext = jnp.pad(ext, ((0, B_pad - B), (0, 0)))

    out = pl.pallas_call(
        _make_kernel(D_in),
        out_shape=jax.ShapeDtypeStruct((B_pad, LANES), jnp.bfloat16),
        grid_spec=pltpu.PrefetchScalarGridSpec(
            num_scalar_prefetch=0,
            grid=(B_pad // tb,),
            in_specs=[
                pl.BlockSpec((tb, D_in), lambda i: (i, 0)),           # x tile
                pl.BlockSpec((tb, E), lambda i: (i, 0)),              # ext tile
                pl.BlockSpec((4 * LANES, LANES), lambda i: (0, 0)),   # resident weights
                pl.BlockSpec((E, LANES), lambda i: (0, 0)),           # resident W3b
                pl.BlockSpec((8, LANES), lambda i: (0, 0)),           # resident biases
            ],
            out_specs=pl.BlockSpec((tb, LANES), lambda i: (i, 0)),
        ),
        compiler_params=pltpu.CompilerParams(
            # Batch tiles are independent -> shards across both v7x TensorCores.
            dimension_semantics=("parallel",)),
    )(x_flat, ext, w_slab, w3b_op, b_slab)

    # Slice the real output lanes; return f32 to match the torch module's dtype.
    return out[:B, :O].astype(jnp.float32)


def make_params(key, d_in, h1, p, e, h2, o):
    ks = jax.random.split(key, 9)
    s = lambda fan_in: 1.0 / jnp.sqrt(jnp.float32(fan_in))
    w1 = jax.random.normal(ks[0], (d_in, h1), jnp.float32) * s(d_in)
    b1 = jax.random.normal(ks[1], (1, h1), jnp.float32) * 0.01
    w2 = jax.random.normal(ks[2], (h1, p), jnp.float32) * s(h1)
    b2 = jax.random.normal(ks[3], (1, p), jnp.float32) * 0.01
    w3a = jax.random.normal(ks[4], (p, h2), jnp.float32) * s(p + e)
    w3b = jax.random.normal(ks[5], (e, h2), jnp.float32) * s(p + e)
    b3 = jax.random.normal(ks[6], (1, h2), jnp.float32) * 0.01
    w4 = jax.random.normal(ks[7], (h2, o), jnp.float32) * s(h2)
    b4 = jax.random.normal(ks[8], (1, o), jnp.float32) * 0.01
    return (w1, b1, w2, b2, w3a, w3b, b3, w4, b4)


def reference_forward_f32(x_flat, ext, params):
    (w1, b1, w2, b2, w3a, w3b, b3, w4, b4) = params
    h = jnp.maximum(x_flat @ w1 + b1, 0.0)
    pred = h @ w2 + b2                                   # time_series_model output
    cat = jnp.concatenate([pred, ext], axis=-1)
    w3 = jnp.concatenate([w3a, w3b], axis=0)
    z = jnp.maximum(cat @ w3 + b3, 0.0)
    return z @ w4 + b4                                   # external_model output


def reference_forward_bf16(x_flat, ext, params):
    """Mimics the kernel's precision: bf16 operands, f32 accumulation, f32 biases."""
    (w1, b1, w2, b2, w3a, w3b, b3, w4, b4) = params
    bf = jnp.bfloat16
    dot = lambda a, w: jnp.dot(a.astype(bf), w.astype(bf),
                               preferred_element_type=jnp.float32)
    h = jnp.maximum(dot(x_flat, w1) + b1, 0.0)
    pred = dot(h, w2) + b2
    cat = jnp.concatenate([pred, ext], axis=-1)
    w3 = jnp.concatenate([w3a, w3b], axis=0)
    z = jnp.maximum(dot(cat, w3) + b3, 0.0)
    return dot(z, w4) + b4


if __name__ == "__main__":
    key = jax.random.PRNGKey(0)
    kx, kext, kp = jax.random.split(key, 3)

    B, SEQ, FEAT = 16, 8, 4        # time-series input (batch, seq, features)
    D_in = SEQ * FEAT              # flattened
    H1, P = 32, 16                 # time_series_model hidden / prediction length
    E = 8                          # external features ("last_arg")
    H2, O = 32, 16                 # external_model hidden / output

    x = jax.random.normal(kx, (B, SEQ, FEAT), jnp.float32)
    ext = jax.random.normal(kext, (B, E), jnp.float32)
    params = make_params(kp, D_in, H1, P, E, H2, O)

    x_flat = x.reshape(B, D_in)    # glue reshape in plain JAX
    out = combined_forward(x_flat, ext, params)
    out = jax.block_until_ready(out)
    assert out.shape == (B, O)

    ref_bf16 = reference_forward_bf16(x_flat, ext, params)
    ref_f32 = reference_forward_f32(x_flat, ext, params)
    assert jnp.allclose(out, ref_bf16, atol=3e-2, rtol=3e-2), "mismatch vs bf16 reference"
    assert jnp.allclose(out, ref_f32, atol=2e-1, rtol=2e-1), "mismatch vs f32 reference"
    print("KERNEL_OK")
</pallas_src>

<mosaic_0001>
module attributes {stable_mosaic.version = 11 : i64} {
  func.func @kernel(%arg0: i32, %arg1: memref<8x32xf32, #tpu.memory_space<vmem>>, %arg2: memref<8x8xf32, #tpu.memory_space<vmem>>, %arg3: memref<512x128xbf16, #tpu.memory_space<vmem>>, %arg4: memref<8x128xbf16, #tpu.memory_space<vmem>>, %arg5: memref<8x128xf32, #tpu.memory_space<vmem>>, %arg6: memref<8x128xbf16, #tpu.memory_space<vmem>>) attributes {dimension_semantics = [#tpu.dimension_semantics<parallel>], iteration_bounds = array<i64: 2>, scalar_prefetch = 0 : i64, scratch_operands = 0 : i64, tpu.core_type = #tpu.core_type<tc>, window_params = [{transform_indices = @transform_0, window_bounds = array<i64: 8, 32>}, {transform_indices = @transform_1, window_bounds = array<i64: 8, 8>}, {pipeline_mode = #tpu.pipeline_mode<synchronous>, transform_indices = @transform_2, window_bounds = array<i64: 512, 128>}, {pipeline_mode = #tpu.pipeline_mode<synchronous>, transform_indices = @transform_3, window_bounds = array<i64: 8, 128>}, {pipeline_mode = #tpu.pipeline_mode<synchronous>, transform_indices = @transform_4, window_bounds = array<i64: 8, 128>}, {transform_indices = @transform_5, window_bounds = array<i64: 8, 128>}]} {
    %c0 = arith.constant 0 : index
    %c0_0 = arith.constant 0 : index
    %0 = vector.load %arg1[%c0, %c0_0] : memref<8x32xf32, #tpu.memory_space<vmem>>, vector<8x32xf32>
    %1 = arith.truncf %0 : vector<8x32xf32> to vector<8x32xbf16>
    %c0_1 = arith.constant 0 : index
    %c0_2 = arith.constant 0 : index
    %2 = vector.load %arg2[%c0_1, %c0_2] : memref<8x8xf32, #tpu.memory_space<vmem>>, vector<8x8xf32>
    %3 = arith.truncf %2 : vector<8x8xf32> to vector<8x8xbf16>
    %c0_3 = arith.constant 0 : index
    %c0_4 = arith.constant 0 : index
    %4 = vector.load %arg5[%c0_3, %c0_4] : memref<8x128xf32, #tpu.memory_space<vmem>>, vector<8x128xf32>
    %c0_5 = arith.constant 0 : index
    %c0_6 = arith.constant 0 : index
    %5 = vector.load %arg3[%c0_5, %c0_6] : memref<512x128xbf16, #tpu.memory_space<vmem>>, vector<32x128xbf16>
    %cst = arith.constant dense<0.000000e+00> : vector<8x128xf32>
    %6 = tpu.matmul %1, %5, %cst {dimension_numbers = #tpu.dot_dimension_numbers<[1], [0], [0], [1], [0, 0, 1, 1], [], []>} : vector<8x32xbf16>, vector<32x128xbf16>, vector<8x128xf32> -> vector<8x128xf32>
    %7 = vector.extract_strided_slice %4 {offsets = [0, 0], sizes = [1, 128], strides = [1, 1]} : vector<8x128xf32> to vector<1x128xf32>
    %8 = vector.broadcast %7 : vector<1x128xf32> to vector<8x128xf32>
    %9 = arith.addf %6, %8 : vector<8x128xf32>
    %cst_7 = arith.constant 0.000000e+00 : f32
    %10 = vector.broadcast %cst_7 : f32 to vector<8x128xf32>
    %11 = arith.maximumf %9, %10 : vector<8x128xf32>
    %12 = arith.truncf %11 : vector<8x128xf32> to vector<8x128xbf16>
    %c128 = arith.constant 128 : index
    %c0_8 = arith.constant 0 : index
    %13 = vector.load %arg3[%c128, %c0_8] : memref<512x128xbf16, #tpu.memory_space<vmem>>, vector<128x128xbf16>
    %cst_9 = arith.constant dense<0.000000e+00> : vector<8x128xf32>
    %14 = tpu.matmul %12, %13, %cst_9 {dimension_numbers = #tpu.dot_dimension_numbers<[1], [0], [0], [1], [0, 0, 1, 1], [], []>} : vector<8x128xbf16>, vector<128x128xbf16>, vector<8x128xf32> -> vector<8x128xf32>
    %15 = vector.extract_strided_slice %4 {offsets = [1, 0], sizes = [1, 128], strides = [1, 1]} : vector<8x128xf32> to vector<1x128xf32>
    %16 = vector.broadcast %15 : vector<1x128xf32> to vector<8x128xf32>
    %17 = arith.addf %14, %16 : vector<8x128xf32>
    %18 = arith.truncf %17 : vector<8x128xf32> to vector<8x128xbf16>
    %c256 = arith.constant 256 : index
    %c0_10 = arith.constant 0 : index
    %19 = vector.load %arg3[%c256, %c0_10] : memref<512x128xbf16, #tpu.memory_space<vmem>>, vector<128x128xbf16>
    %cst_11 = arith.constant dense<0.000000e+00> : vector<8x128xf32>
    %20 = tpu.matmul %18, %19, %cst_11 {dimension_numbers = #tpu.dot_dimension_numbers<[1], [0], [0], [1], [0, 0, 1, 1], [], []>} : vector<8x128xbf16>, vector<128x128xbf16>, vector<8x128xf32> -> vector<8x128xf32>
    %c0_12 = arith.constant 0 : index
    %c0_13 = arith.constant 0 : index
    %21 = vector.load %arg4[%c0_12, %c0_13] : memref<8x128xbf16, #tpu.memory_space<vmem>>, vector<8x128xbf16>
    %cst_14 = arith.constant dense<0.000000e+00> : vector<8x128xf32>
    %22 = tpu.matmul %3, %21, %cst_14 {dimension_numbers = #tpu.dot_dimension_numbers<[1], [0], [0], [1], [0, 0, 1, 1], [], []>} : vector<8x8xbf16>, vector<8x128xbf16>, vector<8x128xf32> -> vector<8x128xf32>
    %23 = arith.addf %20, %22 : vector<8x128xf32>
    %24 = vector.extract_strided_slice %4 {offsets = [2, 0], sizes = [1, 128], strides = [1, 1]} : vector<8x128xf32> to vector<1x128xf32>
    %25 = vector.broadcast %24 : vector<1x128xf32> to vector<8x128xf32>
    %26 = arith.addf %23, %25 : vector<8x128xf32>
    %cst_15 = arith.constant 0.000000e+00 : f32
    %27 = vector.broadcast %cst_15 : f32 to vector<8x128xf32>
    %28 = arith.maximumf %26, %27 : vector<8x128xf32>
    %29 = arith.truncf %28 : vector<8x128xf32> to vector<8x128xbf16>
    %c384 = arith.constant 384 : index
    %c0_16 = arith.constant 0 : index
    %30 = vector.load %arg3[%c384, %c0_16] : memref<512x128xbf16, #tpu.memory_space<vmem>>, vector<128x128xbf16>
    %cst_17 = arith.constant dense<0.000000e+00> : vector<8x128xf32>
    %31 = tpu.matmul %29, %30, %cst_17 {dimension_numbers = #tpu.dot_dimension_numbers<[1], [0], [0], [1], [0, 0, 1, 1], [], []>} : vector<8x128xbf16>, vector<128x128xbf16>, vector<8x128xf32> -> vector<8x128xf32>
    %32 = vector.extract_strided_slice %4 {offsets = [3, 0], sizes = [1, 128], strides = [1, 1]} : vector<8x128xf32> to vector<1x128xf32>
    %33 = vector.broadcast %32 : vector<1x128xf32> to vector<8x128xf32>
    %34 = arith.addf %31, %33 : vector<8x128xf32>
    %35 = arith.truncf %34 : vector<8x128xf32> to vector<8x128xbf16>
    %c0_18 = arith.constant 0 : index
    %c0_19 = arith.constant 0 : index
    %36 = vector.load %arg6[%c0_18, %c0_19] : memref<8x128xbf16, #tpu.memory_space<vmem>>, vector<8x128xbf16>
    tpu.vector_store %arg6[%c0_18, %c0_19], %35 {strides = array<i32>} : memref<8x128xbf16, #tpu.memory_space<vmem>>, vector<8x128xbf16>,
    return
  }
  func.func @transform_0(%arg0: i32) -> (i32, i32) {
    %c0_i32 = arith.constant 0 : i32
    %c0_i32_0 = arith.constant 0 : i32
    return %arg0, %c0_i32 : i32, i32
  }
  func.func @transform_1(%arg0: i32) -> (i32, i32) {
    %c0_i32 = arith.constant 0 : i32
    %c0_i32_0 = arith.constant 0 : i32
    return %arg0, %c0_i32 : i32, i32
  }
  func.func @transform_2(%arg0: i32) -> (i32, i32) {
    %c0_i32 = arith.constant 0 : i32
    %c0_i32_0 = arith.constant 0 : i32
    %c0_i32_1 = arith.constant 0 : i32
    return %c0_i32, %c0_i32_0 : i32, i32
  }
  func.func @transform_3(%arg0: i32) -> (i32, i32) {
    %c0_i32 = arith.constant 0 : i32
    %c0_i32_0 = arith.constant 0 : i32
    %c0_i32_1 = arith.constant 0 : i32
    return %c0_i32, %c0_i32_0 : i32, i32
  }
  func.func @transform_4(%arg0: i32) -> (i32, i32) {
    %c0_i32 = arith.constant 0 : i32
    %c0_i32_0 = arith.constant 0 : i32
    %c0_i32_1 = arith.constant 0 : i32
    return %c0_i32, %c0_i32_0 : i32, i32
  }
  func.func @transform_5(%arg0: i32) -> (i32, i32) {
    %c0_i32 = arith.constant 0 : i32
    %c0_i32_0 = arith.constant 0 : i32
    return %arg0, %c0_i32 : i32, i32
  }
}

</mosaic_0001>

<llo_original>
// kernel: tpu_custom_call.1
$region0: #{tpu_custom_call.1}
  #allocation0 [shape = 'u32[]', space=smem, size = 0x4, offset = 0x4, fixed_abs, tag = 'smem constant byte address 0x4 - core index']
  #allocation1 [shape = 'u32[144,128]{1,0:T(1,128)}', space=vmem, size = 0x12000, scoped, tag = 'internal scratch']
  %s0 = inlined_call_operand.vmem [shape: f32[16,32], index: 0, kind: input, shape index: {}]
  %s1 = inlined_call_operand.vmem [shape: f32[16,8], index: 1, kind: input, shape index: {}]
  %s2 = inlined_call_operand.hbm [shape: bf16[512,128], index: 2, kind: input, shape index: {}]
  %s3 = inlined_call_operand.vmem [shape: bf16[8,128], index: 3, kind: input, shape index: {}]
  %s4 = inlined_call_operand.vmem [shape: f32[8,128], index: 4, kind: input, shape index: {}]
  %s5 = inlined_call_operand.hbm [shape: bf16[16,128], index: 5, kind: output, shape index: {}]
  %s6 = sld [smem:[#allocation0]]
  $region57: #{tpu_custom_call.1} parent=0
    _
  %s8 = ssub.s32 1, %s6
  %s9 = scalar_select 0, %s8, %s6
  $region1: #{tpu_custom_call.1} parent=0
    #allocation2 [shape = 'u8[131072]{0}', space=vmem, size = 0x20000, scoped, tag = 'input window, operand 2, single buffered']
    #allocation3 [shape = 's32[2]{0}', space=sflag, size = 0x8, scoped, tag = 'scoped memory for tpu_custom_call.1']
    #allocation4 [shape = 's32[2]{0}', space=sflag, size = 0x8, scoped, tag = 'scoped memory for tpu_custom_call.1']
    #allocation5 [shape = 'u8[4096]{0}', space=vmem, size = 0x1000, scoped, tag = 'output window, operand 0']
    %10 = vsyncpa [#allocation3], 0
    %11 = vsyncpa [#allocation4], 0
    %s12 = scalar_lea.sflag [#allocation4], 1
    %13 = vsyncpa %s12, 0
    loop: start=0, step=1, limit=4
    $region2: #{tpu_custom_call.1} parent=1 // loop_pre_header
      _
    $region3: #{tpu_custom_call.1} parent=1 // loop_header
      %s15 = sphi 0, %s19
      %p16 = scmp.ge.s32.totalorder %s15, 4
      %s25 = sphi 0, %s27
      %s28 = sphi 0, %s25
      %s29 = sphi 0, %s28
      %s45 = sphi 0, %s29
      %s51 = sphi 0, %s53
      %s54 = sphi 0, %s51
      %s55 = sphi 0, %s54
      %s71 = sphi 0, %s55
      %s75 = sphi 0, %s75
      %s77 = sphi 0, %s75
      %s78 = sphi 0, %s77
      %s92 = sphi 0, %s78
      %s96 = sphi 0, %s96
      %s98 = sphi 0, %s96
      %s99 = sphi 0, %s98
      %s113 = sphi 0, %s99
      %s117 = sphi 0, %s117
      %s119 = sphi 0, %s117
      %s120 = sphi 0, %s119
      %s134 = sphi 0, %s120
      %s140 = sphi 0, %s142
      %s143 = sphi 0, %s140
      %s144 = sphi 0, %s143
      %s160 = sphi 0, %s144
    $region4: #{tpu_custom_call.1} parent=1 // loop_header_branch
      %18 = sbr.rel (%p16) target = $region8
    $region5: #{tpu_custom_call.1} parent=1 // loop_body
      %s20 = ssub.s32 %s15, 1
      %s21 = ssub.s32 %s15, 2
      %s22 = sadd.s32 %s15, 1
      %s23 = ssub.s32 %s15, %s22
      %p24 = scmp.eq.s32.totalorder %s23, 0
      %s26 = sadd.s32 %s25, 1
      %s27 = scalar_select %p24, %s25, %s26
      %p30 = pneg %p24
      %p31 = scmp.eq.s32.totalorder %s15, 1
      %p32 = por %p30, %p31
      %p33 = scmp.ne.s32.totalorder %s25, %s28
      %p34 = scmp.eq.s32.totalorder %s15, 0
      %p35 = por %p33, %p34
      %p36 = scmp.ne.s32.totalorder %s25, %s28
      %p37 = scmp.eq.s32.totalorder %s20, 1
      %p38 = por %p36, %p37
      %p39 = scmp.ne.s32.totalorder %s28, %s29
      %p40 = scmp.eq.s32.totalorder %s20, 0
      %p41 = por %p39, %p40
      %p42 = scmp.ne.s32.totalorder %s28, %s29
      %p43 = scmp.eq.s32.totalorder %s21, 1
      %p44 = por %p42, %p43
      %p46 = scmp.ne.s32.totalorder %s29, %s45
      %p47 = scmp.eq.s32.totalorder %s21, 0
      %p48 = por %p46, %p47
      %s49 = ssub.s32 %s15, %s22
      %p50 = scmp.eq.s32.totalorder %s49, 0
      %s52 = sadd.s32 %s51, 1
      %s53 = scalar_select %p50, %s51, %s52
      %p56 = pneg %p50
      %p57 = scmp.eq.s32.totalorder %s15, 1
      %p58 = por %p56, %p57
      %p59 = scmp.ne.s32.totalorder %s51, %s54
      %p60 = scmp.eq.s32.totalorder %s15, 0
      %p61 = por %p59, %p60
      %p62 = scmp.ne.s32.totalorder %s51, %s54
      %p63 = scmp.eq.s32.totalorder %s20, 1
      %p64 = por %p62, %p63
      %p65 = scmp.ne.s32.totalorder %s54, %s55
      %p66 = scmp.eq.s32.totalorder %s20, 0
      %p67 = por %p65, %p66
      %p68 = scmp.ne.s32.totalorder %s54, %s55
      %p69 = scmp.eq.s32.totalorder %s21, 1
      %p70 = por %p68, %p69
      %p72 = scmp.ne.s32.totalorder %s55, %s71
      %p73 = scmp.eq.s32.totalorder %s21, 0
      %p74 = por %p72, %p73
      %s76 = sadd.s32 %s75, 1
      %p79 = scmp.eq.s32.totalorder %s15, 1
      %p80 = scmp.ne.s32.totalorder %s75, %s77
      %p81 = scmp.eq.s32.totalorder %s15, 0
      %p82 = por %p80, %p81
      %p83 = scmp.ne.s32.totalorder %s75, %s77
      %p84 = scmp.eq.s32.totalorder %s20, 1
      %p85 = por %p83, %p84
      %p86 = scmp.ne.s32.totalorder %s77, %s78
      %p87 = scmp.eq.s32.totalorder %s20, 0
      %p88 = por %p86, %p87
      %p89 = scmp.ne.s32.totalorder %s77, %s78
      %p90 = scmp.eq.s32.totalorder %s21, 1
      %p91 = por %p89, %p90
      %p93 = scmp.ne.s32.totalorder %s78, %s92
      %p94 = scmp.eq.s32.totalorder %s21, 0
      %p95 = por %p93, %p94
      %s97 = sadd.s32 %s96, 1
      %p100 = scmp.eq.s32.totalorder %s15, 1
      %p101 = scmp.ne.s32.totalorder %s96, %s98
      %p102 = scmp.eq.s32.totalorder %s15, 0
      %p103 = por %p101, %p102
      %p104 = scmp.ne.s32.totalorder %s96, %s98
      %p105 = scmp.eq.s32.totalorder %s20, 1
      %p106 = por %p104, %p105
      %p107 = scmp.ne.s32.totalorder %s98, %s99
      %p108 = scmp.eq.s32.totalorder %s20, 0
      %p109 = por %p107, %p108
      %p110 = scmp.ne.s32.totalorder %s98, %s99
      %p111 = scmp.eq.s32.totalorder %s21, 1
      %p112 = por %p110, %p111
      %p114 = scmp.ne.s32.totalorder %s99, %s113
      %p115 = scmp.eq.s32.totalorder %s21, 0
      %p116 = por %p114, %p115
      %s118 = sadd.s32 %s117, 1
      %p121 = scmp.eq.s32.totalorder %s15, 1
      %p122 = scmp.ne.s32.totalorder %s117, %s119
      %p123 = scmp.eq.s32.totalorder %s15, 0
      %p124 = por %p122, %p123
      %p125 = scmp.ne.s32.totalorder %s117, %s119
      %p126 = scmp.eq.s32.totalorder %s20, 1
      %p127 = por %p125, %p126
      %p128 = scmp.ne.s32.totalorder %s119, %s120
      %p129 = scmp.eq.s32.totalorder %s20, 0
      %p130 = por %p128, %p129
      %p131 = scmp.ne.s32.totalorder %s119, %s120
      %p132 = scmp.eq.s32.totalorder %s21, 1
      %p133 = por %p131, %p132
      %p135 = scmp.ne.s32.totalorder %s120, %s134
      %p136 = scmp.eq.s32.totalorder %s21, 0
      %p137 = por %p135, %p136
      %s138 = ssub.s32 %s15, %s22
      %p139 = scmp.eq.s32.totalorder %s138, 0
      %s141 = sadd.s32 %s140, 1
      %s142 = scalar_select %p139, %s140, %s141
      %p145 = pneg %p139
      %p146 = scmp.eq.s32.totalorder %s15, 1
      %p147 = por %p145, %p146
      %p148 = scmp.ne.s32.totalorder %s140, %s143
      %p149 = scmp.eq.s32.totalorder %s15, 0
      %p150 = por %p148, %p149
      %p151 = scmp.ne.s32.totalorder %s140, %s143
      %p152 = scmp.eq.s32.totalorder %s20, 1
      %p153 = por %p151, %p152
      %p154 = scmp.ne.s32.totalorder %s143, %s144
      %p155 = scmp.eq.s32.totalorder %s20, 0
      %p156 = por %p154, %p155
      %p157 = scmp.ne.s32.totalorder %s143, %s144
      %p158 = scmp.eq.s32.totalorder %s21, 1
      %p159 = por %p157, %p158
      %p161 = scmp.ne.s32.totalorder %s144, %s160
      %p162 = scmp.eq.s32.totalorder %s21, 0
      %p163 = por %p161, %p162
      %p164 = scmp.le.s32.totalorder 1, %s15
      %p165 = scmp.lt.s32.totalorder %s15, 3
      %p166 = pnand %p164, %p165
      %p167 = pneg %p166
      // Predicated region
      $region9: #{tpu_custom_call.1} parent=5 // pred_check
        _
      $region10: #{tpu_custom_call.1} parent=5 // pred_check_branch
        %169 = sbr.rel (%p166) target = $region12
      $region11: #{tpu_custom_call.1} parent=5 // pred_region
        %s170 = ssub.s32 %s15, 1
        // Predicated region
        $region13: #{tpu_custom_call.1} parent=11 // pred_check
          %p171 = pneg %p88
        $region14: #{tpu_custom_call.1} parent=11 // pred_check_branch
          %173 = sbr.rel (%p171) target = $region16
        $region15: #{tpu_custom_call.1} parent=11 // pred_region
          %s175 = ssub.s32 4096, 4096
          %176 = vsyncadd [#allocation3], %s175
          %s177 = sshll.u32 [#allocation2], 4
          %s178 = int_to_ptr.vmem [resolvable:$true] %s177
          %183 = dma.hbm_to_vmem [thread:$0]  %s2, 4096, %s178, [#allocation3], 64, 64, 4
        $region16: #{tpu_custom_call.1} parent=11 // pred_fallthru
          _
        // Predicated region
        $region17: #{tpu_custom_call.1} parent=11 // pred_check
          %p184 = pneg %p109
        $region18: #{tpu_custom_call.1} parent=11 // pred_check_branch
          %186 = sbr.rel (%p184) target = $region20
        $region19: #{tpu_custom_call.1} parent=11 // pred_region
          _
        $region20: #{tpu_custom_call.1} parent=11 // pred_fallthru
          _
        // Predicated region
        $region21: #{tpu_custom_call.1} parent=11 // pred_check
          %p187 = pneg %p130
        $region22: #{tpu_custom_call.1} parent=11 // pred_check_branch
          %189 = sbr.rel (%p187) target = $region24
        $region23: #{tpu_custom_call.1} parent=11 // pred_region
          _
        $region24: #{tpu_custom_call.1} parent=11 // pred_fallthru
          _
      $region12: #{tpu_custom_call.1} parent=5 // pred_fallthru
        _
      %p190 = scmp.lt.s32.totalorder %s15, 2
      // Predicated region
      $region25: #{tpu_custom_call.1} parent=5 // pred_check
        %p191 = pneg %p190
      $region26: #{tpu_custom_call.1} parent=5 // pred_check_branch
        %193 = sbr.rel (%p191) target = $region28
      $region27: #{tpu_custom_call.1} parent=5 // pred_region
        // Predicated region
        $region29: #{tpu_custom_call.1} parent=27 // pred_check
          %p194 = pneg %p35
        $region30: #{tpu_custom_call.1} parent=27 // pred_check_branch
          %196 = sbr.rel (%p194) target = $region32
        $region31: #{tpu_custom_call.1} parent=27 // pred_region
          %p197 = scmp.lt.s32.totalorder %s15, 1
          %s198 = scalar_select %p197, %s15, 1
          %s199 = smul.addr %s198, 8
          %s200 = scalar_lea.vmem %s0, %s199
        $region32: #{tpu_custom_call.1} parent=27 // pred_fallthru
          _
        // Predicated region
        $region33: #{tpu_custom_call.1} parent=27 // pred_check
          %p201 = pneg %p61
        $region34: #{tpu_custom_call.1} parent=27 // pred_check_branch
          %203 = sbr.rel (%p201) target = $region36
        $region35: #{tpu_custom_call.1} parent=27 // pred_region
          %p204 = scmp.lt.s32.totalorder %s15, 1
          %s205 = scalar_select %p204, %s15, 1
          %s206 = smul.addr %s205, 8
          %s207 = scalar_lea.vmem %s1, %s206
        $region36: #{tpu_custom_call.1} parent=27 // pred_fallthru
          _
      $region28: #{tpu_custom_call.1} parent=5 // pred_fallthru
        _
      %p208 = scmp.le.s32.totalorder 1, %s15
      %p209 = scmp.lt.s32.totalorder %s15, 3
      %p210 = pnand %p208, %p209
      %p211 = pneg %p210
      // Predicated region
      $region37: #{tpu_custom_call.1} parent=5 // pred_check
        _
      $region38: #{tpu_custom_call.1} parent=5 // pred_check_branch
        %213 = sbr.rel (%p210) target = $region40
      $region39: #{tpu_custom_call.1} parent=5 // pred_region
        %s214 = ssub.s32 %s15, 1
        // Predicated region
        $region41: #{tpu_custom_call.1} parent=39 // pred_check
          %p215 = pneg %p88
        $region42: #{tpu_custom_call.1} parent=39 // pred_check_branch
          %217 = sbr.rel (%p215) target = $region44
        $region43: #{tpu_custom_call.1} parent=39 // pred_region
          %218 = dma.done [#allocation3], 4096
        $region44: #{tpu_custom_call.1} parent=39 // pred_fallthru
          _
        %p219 = scmp.lt.s32.totalorder %s20, 1
        %s220 = scalar_select %p219, %s20, 1
        %s221 = smul.addr %s220, 8
        %s222 = scalar_lea.vmem %s0, %s221
        %p223 = pneg %p41
        %p224 = pneg %p38
        %p225 = scmp.lt.s32.totalorder %s20, 1
        %s226 = scalar_select %p225, %s20, 1
        %s227 = smul.addr %s226, 8
        %s228 = scalar_lea.vmem %s1, %s227
        %p229 = pneg %p67
        %p230 = pneg %p64
        %p231 = pneg %p88
        %p232 = pneg %p85
        %p233 = pneg %p109
        %p234 = pneg %p106
        %p235 = pneg %p130
        %p236 = pneg %p127
        %p237 = pneg %p156
        %p238 = pneg %p153
        %s239 = sand.u32 %s143, 1
        %s240 = scalar_lea.sflag [#allocation4], %s239
        %s241 = sand.u32 %s143, 1
        %s242 = smul.addr %s241, 4
        %s243 = scalar_lea.vmem [#allocation5], %s242
        %p244 = scmp.lt.s32.totalorder %s20, 1
        %s245 = scalar_select %p244, %s20, 1
        %s246 = smul.addr %s245, 8
        %s247 = scalar_lea.vmem %s0, %s246
        %p248 = scmp.lt.s32.totalorder %s20, 1
        %s249 = scalar_select %p248, %s20, 1
        %s250 = smul.addr %s249, 8
        %s251 = scalar_lea.vmem %s1, %s250
        %v253 = vld [vmem:[%s247] sm:$0xff]
        %v254 = vpack.c.bf16 %v253, %v253
        %v255 = vld [vmem:[%s251] sm:$0xff]
        %v256 = vpack.c.bf16 %v255, %v255
        %v257 = vld [vmem:[%s4] sm:$0xff]
        %v258 = vld [vmem:[#allocation2] sm:$0xf]
        %v259 = vld [vmem:[#allocation2 + $0x4] sm:$0xf]
        %v260 = vld [vmem:[#allocation2 + $0x8] sm:$0xf]
        %v261 = vld [vmem:[#allocation2 + $0xc] sm:$0xf]
        %v262 = vlaneseq
        %v263 = vshrl.u32 %v262, 7
        %v264 = vsub.s32 0, %v263
        %v265 = vrot.slane %v257, %v264
        %v270 = vunpack.c.l.b16 %v258
        %v271 = vunpack.c.l.b16 %v259
        %v272 = vunpack.c.l.b16 %v260
        %v273 = vunpack.c.l.b16 %v261
        %v274 = vpack.c.b16 %v271, %v270
        %v275 = vpack.c.b16 %v273, %v272
        %vm278 = vcmask 261120
        %v280 = vsel %vm278, %v254, 0
        %282 = vmatprep.subr.bf16.mxu0 0
        %283 = vmatpush1.bf16.msra.mxu0 0
        %284 = vmatprep.subr.bf16.mxu0 0
        %285 = vmatpush1.bf16.msra.mxu0 0
        %286 = vmatprep.subr.bf16.mxu0 0
        %287 = vmatpush1.bf16.msra.mxu0 0
        %288 = vmatprep.subr.bf16.mxu0 0
        %289 = vmatpush1.bf16.msra.mxu0 0
        %290 = vmatprep.subr.bf16.mxu0 0
        %291 = vmatpush1.bf16.msra.mxu0 0
        %292 = vmatprep.subr.bf16.mxu0 0
        %293 = vmatpush1.bf16.msra.mxu0 0
        %294 = vmatprep.subr.bf16.mxu0 0
        %295 = vmatpush1.bf16.msra.mxu0 %v275
        %296 = vmatprep.subr.bf16.mxu0 0
        %297 = vmatpush1.bf16.msra.mxu0 %v274
        %298 = vmatprep.subr.bf16.mxu0 0
        %299 = vmatpush2.bf16.msra.mxu0 0
        %300 = vmatprep.subr.bf16.mxu0 0
        %301 = vmatpush2.bf16.msra.mxu0 0
        %302 = vmatprep.subr.bf16.mxu0 0
        %303 = vmatpush2.bf16.msra.mxu0 0
        %304 = vmatprep.subr.bf16.mxu0 0
        %305 = vmatpush2.bf16.msra.mxu0 0
        %306 = vmatprep.subr.bf16.mxu0 0
        %307 = vmatpush2.bf16.msra.mxu0 0
        %308 = vmatprep.subr.bf16.mxu0 0
        %309 = vmatpush2.bf16.msra.mxu0 0
        %310 = vmatprep.subr.bf16.mxu0 0
        %311 = vmatpush2.bf16.msra.mxu0 0
        %312 = vmatprep.subr.bf16.mxu0 0
        %313 = vmatpush2.bf16.msra.mxu0 0
        %314 = vmatprep.mubr.bf16.mxu0 0
        %315 = vmatmul.mubr.bf16.gmra.mxu0 %v280
        %v316 = vpop.f32.mrf.mxu0
        %v317 = vadd.f32 %v265, %v316
        %v318 = vpop.f32.mrf.mxu0
        %v319 = vpop.f32.mrf.mxu0
        %v320 = vpop.f32.mrf.mxu0
        %321 = vdwg.mxu0
        %v322 = vmax.f32 %v317, 0.0
        %v323 = vpack.c.bf16 %v322, %v322
        %v324 = vld [vmem:[#allocation2 + $0x40] sm:$0xf]
        %v325 = vld [vmem:[#allocation2 + $0x44] sm:$0xf]
        %v326 = vld [vmem:[#allocation2 + $0x48] sm:$0xf]
        %v327 = vld [vmem:[#allocation2 + $0x4c] sm:$0xf]
        %v328 = vld [vmem:[#allocation2 + $0x50] sm:$0xf]
        %v329 = vld [vmem:[#allocation2 + $0x54] sm:$0xf]
        %v330 = vld [vmem:[#allocation2 + $0x58] sm:$0xf]
        %v331 = vld [vmem:[#allocation2 + $0x5c] sm:$0xf]
        %v332 = vld [vmem:[#allocation2 + $0x60] sm:$0xf]
        %v333 = vld [vmem:[#allocation2 + $0x64] sm:$0xf]
        %v334 = vld [vmem:[#allocation2 + $0x68] sm:$0xf]
        %v335 = vld [vmem:[#allocation2 + $0x6c] sm:$0xf]
        %v336 = vld [vmem:[#allocation2 + $0x70] sm:$0xf]
        %v337 = vld [vmem:[#allocation2 + $0x74] sm:$0xf]
        %v338 = vld [vmem:[#allocation2 + $0x78] sm:$0xf]
        %v339 = vld [vmem:[#allocation2 + $0x7c] sm:$0xf]
        %v340 = vlaneseq
        %v341 = vshrl.u32 %v340, 7
        %v342 = vsub.s32 1, %v341
        %v343 = vrot.slane %v257, %v342
        %v360 = vunpack.c.l.b16 %v324
        %v361 = vunpack.c.l.b16 %v325
        %v362 = vunpack.c.l.b16 %v326
        %v363 = vunpack.c.l.b16 %v327
        %v364 = vunpack.c.l.b16 %v328
        %v365 = vunpack.c.l.b16 %v329
        %v366 = vunpack.c.l.b16 %v330
        %v367 = vunpack.c.l.b16 %v331
        %v368 = vunpack.c.l.b16 %v332
        %v369 = vunpack.c.l.b16 %v333
        %v370 = vunpack.c.l.b16 %v334
        %v371 = vunpack.c.l.b16 %v335
        %v372 = vunpack.c.l.b16 %v336
        %v373 = vunpack.c.l.b16 %v337
        %v374 = vunpack.c.l.b16 %v338
        %v375 = vunpack.c.l.b16 %v339
        %v376 = vpack.c.b16 %v361, %v360
        %v377 = vpack.c.b16 %v363, %v362
        %v378 = vpack.c.b16 %v365, %v364
        %v379 = vpack.c.b16 %v367, %v366
        %v380 = vpack.c.b16 %v369, %v368
        %v381 = vpack.c.b16 %v371, %v370
        %v382 = vpack.c.b16 %v373, %v372
        %v383 = vpack.c.b16 %v375, %v374
        %392 = vmatprep.subr.bf16.mxu0 0
        %393 = vmatpush1.bf16.msra.mxu0 %v383
        %394 = vmatprep.subr.bf16.mxu0 0
        %395 = vmatpush1.bf16.msra.mxu0 %v382
        %396 = vmatprep.subr.bf16.mxu0 0
        %397 = vmatpush1.bf16.msra.mxu0 %v381
        %398 = vmatprep.subr.bf16.mxu0 0
        %399 = vmatpush1.bf16.msra.mxu0 %v380
        %400 = vmatprep.subr.bf16.mxu0 0
        %401 = vmatpush1.bf16.msra.mxu0 %v379
        %402 = vmatprep.subr.bf16.mxu0 0
        %403 = vmatpush1.bf16.msra.mxu0 %v378
        %404 = vmatprep.subr.bf16.mxu0 0
        %405 = vmatpush1.bf16.msra.mxu0 %v377
        %406 = vmatprep.subr.bf16.mxu0 0
        %407 = vmatpush1.bf16.msra.mxu0 %v376
        %408 = vmatprep.subr.bf16.mxu0 0
        %409 = vmatpush2.bf16.msra.mxu0 0
        %410 = vmatprep.subr.bf16.mxu0 0
        %411 = vmatpush2.bf16.msra.mxu0 0
        %412 = vmatprep.subr.bf16.mxu0 0
        %413 = vmatpush2.bf16.msra.mxu0 0
        %414 = vmatprep.subr.bf16.mxu0 0
        %415 = vmatpush2.bf16.msra.mxu0 0
        %416 = vmatprep.subr.bf16.mxu0 0
        %417 = vmatpush2.bf16.msra.mxu0 0
        %418 = vmatprep.subr.bf16.mxu0 0
        %419 = vmatpush2.bf16.msra.mxu0 0
        %420 = vmatprep.subr.bf16.mxu0 0
        %421 = vmatpush2.bf16.msra.mxu0 0
        %422 = vmatprep.subr.bf16.mxu0 0
        %423 = vmatpush2.bf16.msra.mxu0 0
        %424 = vmatprep.mubr.bf16.mxu0 0
        %425 = vmatmul.mubr.bf16.gmra.mxu0 %v323
        %v426 = vpop.f32.mrf.mxu0
        %v427 = vadd.f32 %v343, %v426
        %v428 = vpop.f32.mrf.mxu0
        %v429 = vpop.f32.mrf.mxu0
        %v430 = vpop.f32.mrf.mxu0
        %431 = vdwg.mxu0
        %v432 = vpack.c.bf16 %v427, %v427
        %v433 = vld [vmem:[#allocation2 + $0x80] sm:$0xf]
        %v434 = vld [vmem:[#allocation2 + $0x84] sm:$0xf]
        %v435 = vld [vmem:[#allocation2 + $0x88] sm:$0xf]
        %v436 = vld [vmem:[#allocation2 + $0x8c] sm:$0xf]
        %v437 = vld [vmem:[#allocation2 + $0x90] sm:$0xf]
        %v438 = vld [vmem:[#allocation2 + $0x94] sm:$0xf]
        %v439 = vld [vmem:[#allocation2 + $0x98] sm:$0xf]
        %v440 = vld [vmem:[#allocation2 + $0x9c] sm:$0xf]
        %v441 = vld [vmem:[#allocation2 + $0xa0] sm:$0xf]
        %v442 = vld [vmem:[#allocation2 + $0xa4] sm:$0xf]
        %v443 = vld [vmem:[#allocation2 + $0xa8] sm:$0xf]
        %v444 = vld [vmem:[#allocation2 + $0xac] sm:$0xf]
        %v445 = vld [vmem:[#allocation2 + $0xb0] sm:$0xf]
        %v446 = vld [vmem:[#allocation2 + $0xb4] sm:$0xf]
        %v447 = vld [vmem:[#allocation2 + $0xb8] sm:$0xf]
        %v448 = vld [vmem:[#allocation2 + $0xbc] sm:$0xf]
        %v449 = vld [vmem:[%s3] sm:$0xf]
        %vm450 = vcmask 64512
        %v452 = vsel %vm450, %v256, 0
        %vm454 = vcmask 1043456
        %v456 = vsel %vm454, %v449, 0
        %458 = vmatprep.subr.bf16.mxu0 0
        %459 = vmatpush1.bf16.msra.mxu0 0
        %460 = vmatprep.subr.bf16.mxu0 0
        %461 = vmatpush1.bf16.msra.mxu0 0
        %462 = vmatprep.subr.bf16.mxu0 0
        %463 = vmatpush1.bf16.msra.mxu0 0
        %464 = vmatprep.subr.bf16.mxu0 0
        %465 = vmatpush1.bf16.msra.mxu0 0
        %466 = vmatprep.subr.bf16.mxu0 0
        %467 = vmatpush1.bf16.msra.mxu0 0
        %468 = vmatprep.subr.bf16.mxu0 0
        %469 = vmatpush1.bf16.msra.mxu0 0
        %470 = vmatprep.subr.bf16.mxu0 0
        %471 = vmatpush1.bf16.msra.mxu0 0
        %472 = vmatprep.subr.bf16.mxu0 0
        %473 = vmatpush1.bf16.msra.mxu0 %v456
        %474 = vmatprep.subr.bf16.mxu0 0
        %475 = vmatpush2.bf16.msra.mxu0 0
        %476 = vmatprep.subr.bf16.mxu0 0
        %477 = vmatpush2.bf16.msra.mxu0 0
        %478 = vmatprep.subr.bf16.mxu0 0
        %479 = vmatpush2.bf16.msra.mxu0 0
        %480 = vmatprep.subr.bf16.mxu0 0
        %481 = vmatpush2.bf16.msra.mxu0 0
        %482 = vmatprep.subr.bf16.mxu0 0
        %483 = vmatpush2.bf16.msra.mxu0 0
        %484 = vmatprep.subr.bf16.mxu0 0
        %485 = vmatpush2.bf16.msra.mxu0 0
        %486 = vmatprep.subr.bf16.mxu0 0
        %487 = vmatpush2.bf16.msra.mxu0 0
        %488 = vmatprep.subr.bf16.mxu0 0
        %489 = vmatpush2.bf16.msra.mxu0 0
        %490 = vmatprep.mubr.bf16.mxu0 0
        %491 = vmatmul.mubr.bf16.gmra.mxu0 %v452
        %v492 = vpop.f32.mrf.mxu0
        %v493 = vadd.f32 0.0, %v492
        %v494 = vpop.f32.mrf.mxu0
        %v495 = vpop.f32.mrf.mxu0
        %v496 = vpop.f32.mrf.mxu0
        %497 = vdwg.mxu0
        %v514 = vunpack.c.l.b16 %v433
        %v515 = vunpack.c.l.b16 %v434
        %v516 = vunpack.c.l.b16 %v435
        %v517 = vunpack.c.l.b16 %v436
        %v518 = vunpack.c.l.b16 %v437
        %v519 = vunpack.c.l.b16 %v438
        %v520 = vunpack.c.l.b16 %v439
        %v521 = vunpack.c.l.b16 %v440
        %v522 = vunpack.c.l.b16 %v441
        %v523 = vunpack.c.l.b16 %v442
        %v524 = vunpack.c.l.b16 %v443
        %v525 = vunpack.c.l.b16 %v444
        %v526 = vunpack.c.l.b16 %v445
        %v527 = vunpack.c.l.b16 %v446
        %v528 = vunpack.c.l.b16 %v447
        %v529 = vunpack.c.l.b16 %v448
        %v530 = vpack.c.b16 %v515, %v514
        %v531 = vpack.c.b16 %v517, %v516
        %v532 = vpack.c.b16 %v519, %v518
        %v533 = vpack.c.b16 %v521, %v520
        %v534 = vpack.c.b16 %v523, %v522
        %v535 = vpack.c.b16 %v525, %v524
        %v536 = vpack.c.b16 %v527, %v526
        %v537 = vpack.c.b16 %v529, %v528
        %546 = vmatprep.subr.bf16.mxu0 0
        %547 = vmatpush1.bf16.msra.mxu0 %v537
        %548 = vmatprep.subr.bf16.mxu0 0
        %549 = vmatpush1.bf16.msra.mxu0 %v536
        %550 = vmatprep.subr.bf16.mxu0 0
        %551 = vmatpush1.bf16.msra.mxu0 %v535
        %552 = vmatprep.subr.bf16.mxu0 0
        %553 = vmatpush1.bf16.msra.mxu0 %v534
        %554 = vmatprep.subr.bf16.mxu0 0
        %555 = vmatpush1.bf16.msra.mxu0 %v533
        %556 = vmatprep.subr.bf16.mxu0 0
        %557 = vmatpush1.bf16.msra.mxu0 %v532
        %558 = vmatprep.subr.bf16.mxu0 0
        %559 = vmatpush1.bf16.msra.mxu0 %v531
        %560 = vmatprep.subr.bf16.mxu0 0
        %561 = vmatpush1.bf16.msra.mxu0 %v530
        %562 = vmatprep.subr.bf16.mxu0 0
        %563 = vmatpush2.bf16.msra.mxu0 0
        %564 = vmatprep.subr.bf16.mxu0 0
        %565 = vmatpush2.bf16.msra.mxu0 0
        %566 = vmatprep.subr.bf16.mxu0 0
        %567 = vmatpush2.bf16.msra.mxu0 0
        %568 = vmatprep.subr.bf16.mxu0 0
        %569 = vmatpush2.bf16.msra.mxu0 0
        %570 = vmatprep.subr.bf16.mxu0 0
        %571 = vmatpush2.bf16.msra.mxu0 0
        %572 = vmatprep.subr.bf16.mxu0 0
        %573 = vmatpush2.bf16.msra.mxu0 0
        %574 = vmatprep.subr.bf16.mxu0 0
        %575 = vmatpush2.bf16.msra.mxu0 0
        %576 = vmatprep.subr.bf16.mxu0 0
        %577 = vmatpush2.bf16.msra.mxu0 0
        %578 = vmatprep.mubr.bf16.mxu0 0
        %579 = vmatmul.mubr.bf16.gmra.mxu0 %v432
        %v580 = vpop.f32.mrf.mxu0
        %v581 = vadd.f32 %v493, %v580
        %v582 = vpop.f32.mrf.mxu0
        %v583 = vpop.f32.mrf.mxu0
        %v584 = vpop.f32.mrf.mxu0
        %585 = vdwg.mxu0
        %v586 = vlaneseq
        %v587 = vshrl.u32 %v586, 7
        %v588 = vsub.s32 2, %v587
        %v589 = vrot.slane %v257, %v588
        %v590 = vadd.f32 %v581, %v589
        %v591 = vmax.f32 %v590, 0.0
        %v592 = vpack.c.bf16 %v591, %v591
        %v593 = vld [vmem:[#allocation2 + $0xc0] sm:$0xf]
        %v594 = vld [vmem:[#allocation2 + $0xc4] sm:$0xf]
        %v595 = vld [vmem:[#allocation2 + $0xc8] sm:$0xf]
        %v596 = vld [vmem:[#allocation2 + $0xcc] sm:$0xf]
        %v597 = vld [vmem:[#allocation2 + $0xd0] sm:$0xf]
        %v598 = vld [vmem:[#allocation2 + $0xd4] sm:$0xf]
        %v599 = vld [vmem:[#allocation2 + $0xd8] sm:$0xf]
        %v600 = vld [vmem:[#allocation2 + $0xdc] sm:$0xf]
        %v601 = vld [vmem:[#allocation2 + $0xe0] sm:$0xf]
        %v602 = vld [vmem:[#allocation2 + $0xe4] sm:$0xf]
        %v603 = vld [vmem:[#allocation2 + $0xe8] sm:$0xf]
        %v604 = vld [vmem:[#allocation2 + $0xec] sm:$0xf]
        %v605 = vld [vmem:[#allocation2 + $0xf0] sm:$0xf]
        %v606 = vld [vmem:[#allocation2 + $0xf4] sm:$0xf]
        %v607 = vld [vmem:[#allocation2 + $0xf8] sm:$0xf]
        %v608 = vld [vmem:[#allocation2 + $0xfc] sm:$0xf]
        %v609 = vlaneseq
        %v610 = vshrl.u32 %v609, 7
        %v611 = vsub.s32 3, %v610
        %v612 = vrot.slane %v257, %v611
        %v629 = vunpack.c.l.b16 %v593
        %v630 = vunpack.c.l.b16 %v594
        %v631 = vunpack.c.l.b16 %v595
        %v632 = vunpack.c.l.b16 %v596
        %v633 = vunpack.c.l.b16 %v597
        %v634 = vunpack.c.l.b16 %v598
        %v635 = vunpack.c.l.b16 %v599
        %v636 = vunpack.c.l.b16 %v600
        %v637 = vunpack.c.l.b16 %v601
        %v638 = vunpack.c.l.b16 %v602
        %v639 = vunpack.c.l.b16 %v603
        %v640 = vunpack.c.l.b16 %v604
        %v641 = vunpack.c.l.b16 %v605
        %v642 = vunpack.c.l.b16 %v606
        %v643 = vunpack.c.l.b16 %v607
        %v644 = vunpack.c.l.b16 %v608
        %v645 = vpack.c.b16 %v630, %v629
        %v646 = vpack.c.b16 %v632, %v631
        %v647 = vpack.c.b16 %v634, %v633
        %v648 = vpack.c.b16 %v636, %v635
        %v649 = vpack.c.b16 %v638, %v637
        %v650 = vpack.c.b16 %v640, %v639
        %v651 = vpack.c.b16 %v642, %v641
        %v652 = vpack.c.b16 %v644, %v643
        %661 = vmatprep.subr.bf16.mxu0 0
        %662 = vmatpush1.bf16.msra.mxu0 %v652
        %663 = vmatprep.subr.bf16.mxu0 0
        %664 = vmatpush1.bf16.msra.mxu0 %v651
        %665 = vmatprep.subr.bf16.mxu0 0
        %666 = vmatpush1.bf16.msra.mxu0 %v650
        %667 = vmatprep.subr.bf16.mxu0 0
        %668 = vmatpush1.bf16.msra.mxu0 %v649
        %669 = vmatprep.subr.bf16.mxu0 0
        %670 = vmatpush1.bf16.msra.mxu0 %v648
        %671 = vmatprep.subr.bf16.mxu0 0
        %672 = vmatpush1.bf16.msra.mxu0 %v647
        %673 = vmatprep.subr.bf16.mxu0 0
        %674 = vmatpush1.bf16.msra.mxu0 %v646
        %675 = vmatprep.subr.bf16.mxu0 0
        %676 = vmatpush1.bf16.msra.mxu0 %v645
        %677 = vmatprep.subr.bf16.mxu0 0
        %678 = vmatpush2.bf16.msra.mxu0 0
        %679 = vmatprep.subr.bf16.mxu0 0
        %680 = vmatpush2.bf16.msra.mxu0 0
        %681 = vmatprep.subr.bf16.mxu0 0
        %682 = vmatpush2.bf16.msra.mxu0 0
        %683 = vmatprep.subr.bf16.mxu0 0
        %684 = vmatpush2.bf16.msra.mxu0 0
        %685 = vmatprep.subr.bf16.mxu0 0
        %686 = vmatpush2.bf16.msra.mxu0 0
        %687 = vmatprep.subr.bf16.mxu0 0
        %688 = vmatpush2.bf16.msra.mxu0 0
        %689 = vmatprep.subr.bf16.mxu0 0
        %690 = vmatpush2.bf16.msra.mxu0 0
        %691 = vmatprep.subr.bf16.mxu0 0
        %692 = vmatpush2.bf16.msra.mxu0 0
        %693 = vmatprep.mubr.bf16.mxu0 0
        %694 = vmatmul.mubr.bf16.gmra.mxu0 %v592
        %v695 = vpop.f32.mrf.mxu0
        %v696 = vadd.f32 %v612, %v695
        %v697 = vpop.f32.mrf.mxu0
        %v698 = vpop.f32.mrf.mxu0
        %v699 = vpop.f32.mrf.mxu0
        %700 = vdwg.mxu0
        %v701 = vpack.c.bf16 %v696, %v696
        %702 = vst [vmem:[%s243] sm:$0xf] %v701
        %s703 = sand.u32 %s143, 1
        %s704 = scalar_lea.sflag [#allocation4], %s703
        %s705 = sand.u32 %s143, 1
        %s706 = smul.addr %s705, 4
        %s707 = scalar_lea.vmem [#allocation5], %s706
        // Predicated region
        $region45: #{tpu_custom_call.1} parent=39 // pred_check
          %p708 = pneg %p153
        $region46: #{tpu_custom_call.1} parent=39 // pred_check_branch
          %710 = sbr.rel (%p708) target = $region48
        $region47: #{tpu_custom_call.1} parent=39 // pred_region
          %s712 = ssub.s32 64, 64
          %713 = vsyncadd %s704, %s712
          %s714 = smul.addr %s20, 64
          %s715 = scalar_lea.hbm %s5, %s714
          %s717 = sshll.u32 %s707, 4
          %s718 = int_to_ptr.vmem [resolvable:$true] %s717
          %720 = dma.vmem_to_hbm [thread:$0]  %s718, 64, %s715, %s704
        $region48: #{tpu_custom_call.1} parent=39 // pred_fallthru
          _
      $region40: #{tpu_custom_call.1} parent=5 // pred_fallthru
        _
      %p721 = scmp.le.s32.totalorder 2, %s15
      // Predicated region
      $region49: #{tpu_custom_call.1} parent=5 // pred_check
        %p722 = pneg %p721
      $region50: #{tpu_custom_call.1} parent=5 // pred_check_branch
        %724 = sbr.rel (%p722) target = $region52
      $region51: #{tpu_custom_call.1} parent=5 // pred_region
        %s725 = ssub.s32 %s15, 2
        // Predicated region
        $region53: #{tpu_custom_call.1} parent=51 // pred_check
          %p726 = pneg %p159
        $region54: #{tpu_custom_call.1} parent=51 // pred_check_branch
          %728 = sbr.rel (%p726) target = $region56
        $region55: #{tpu_custom_call.1} parent=51 // pred_region
          %s729 = sand.u32 %s144, 1
          %s730 = scalar_lea.sflag [#allocation4], %s729
          %s731 = sand.u32 %s144, 1
          %s732 = smul.addr %s731, 4
          %s733 = scalar_lea.vmem [#allocation5], %s732
          %734 = dma.done %s730, 64
        $region56: #{tpu_custom_call.1} parent=51 // pred_fallthru
          _
      $region52: #{tpu_custom_call.1} parent=5 // pred_fallthru
        _
    $region6: #{tpu_custom_call.1} parent=1 // loop_footer
      %s19 = sadd.s32 1, %s15
    $region7: #{tpu_custom_call.1} parent=1 // loop_footer_branch
      %14 = sbr.rel target = $region3
    $region8: #{tpu_custom_call.1} parent=1 // loop_exit
      _
    %735 = vsyncpa [#allocation3], 1
    %s736 = scalar_lea.sflag [#allocation3], 1
    %737 = vsyncpa %s736, 1
    %738 = vsyncpa [#allocation4], 1
    %s739 = scalar_lea.sflag [#allocation4], 1
    %740 = vsyncpa %s739, 1

</llo_original>
